<compile_context>
chip_gen: v6e
topology: v6e:2x2x1
jax: 0.10.0
libtpu: 0.0.40
codegen_flags: <defaults>
</compile_context>

<pallas_src>
import jax
import jax.numpy as jnp
from jax.experimental import pallas as pl
from jax.experimental.pallas import tpu as pltpu


def toy_mlp_kernel(x_ref, w1_ref, b1_ref, w2_ref, b2_ref, o_ref):
    # x arrives in its native dtype; cast in-kernel to the MXU operand dtype
    # (free on the idle VPU) instead of paying an extra wrapper HBM pass.
    x = x_ref[...].astype(w1_ref.dtype)
    # net1: MXU matmul with f32 accumulation; bias-add + ReLU on the f32
    # accumulator (f32 VPU path, fine on all chip generations incl. v5e).
    h = jnp.dot(x, w1_ref[...], preferred_element_type=jnp.float32)
    h = jnp.maximum(h + b1_ref[...], 0.0)
    # net2: cast vreg-resident activations to the weight dtype for the MXU,
    # accumulate in f32, bias-add in f32.  h / y each fit in lane-padded
    # vreg tiles, so no VMEM scratch is needed.
    y = jnp.dot(h.astype(w2_ref.dtype), w2_ref[...],
                preferred_element_type=jnp.float32)
    o_ref[...] = (y + b2_ref[...]).astype(o_ref.dtype)


def toy_model_forward(x, w1_t, b1, w2_t, b2, *, batch_tile=16384,
                      compute_dtype=jnp.bfloat16):
    """x: [B, 10] (native dtype); w1_t: [10, 10]; b1: [1, 10]; w2_t: [10, 5]; b2: [1, 5]."""
    B, in_dim = x.shape
    hid = w1_t.shape[1]
    out_dim = w2_t.shape[1]

    # Only the tiny weights are cast in the wrapper; x stays in its native
    # dtype (no extra HBM pass over the big operand).
    w1_c = w1_t.astype(compute_dtype)
    w2_c = w2_t.astype(compute_dtype)
    b1_c = b1.astype(jnp.float32)
    b2_c = b2.astype(jnp.float32)

    # Batch tile: large by default to amortize per-grid-step overhead.
    # Granule 16 for sub-32-bit MXU operands (2 rows / sublane packing),
    # 8 otherwise.  The ragged last block is handled by Pallas (out-of-bounds
    # output rows are masked), so no pad / slice is needed.  NOTE: this only
    # stays correct as long as the kernel has no cross-row reduction.
    granule = 16 if jnp.dtype(compute_dtype).itemsize < 4 else 8
    tb = max(granule, min(batch_tile, pl.cdiv(B, granule) * granule))
    tb = pl.cdiv(tb, granule) * granule
    num_tiles = pl.cdiv(B, tb)

    # VMEM: x and out blocks are lane-padded to 128 lanes, so the two
    # double-buffered pairs cost ~2 * 2 * 512 * tb bytes (~32 MiB @ tb=16384).
    # 48 MiB scoped limit leaves headroom and fits v7x's 64 MiB/TC physical.
    x_item = jnp.dtype(x.dtype).itemsize
    c_item = jnp.dtype(compute_dtype).itemsize
    flops = 2 * B * (in_dim * hid + hid * out_dim)
    bytes_accessed = (B * in_dim * x_item                        # x reads
                      + B * out_dim * 4                          # out writes (f32)
                      + (in_dim * hid + hid * out_dim) * c_item  # weights
                      + (hid + out_dim) * 4)                     # biases

    return pl.pallas_call(
        toy_mlp_kernel,
        out_shape=jax.ShapeDtypeStruct((B, out_dim), jnp.float32),
        grid_spec=pltpu.PrefetchScalarGridSpec(
            num_scalar_prefetch=0,
            grid=(num_tiles,),
            in_specs=[
                pl.BlockSpec((tb, in_dim), lambda i: (i, 0)),    # x: batch-tiled
                pl.BlockSpec((in_dim, hid), lambda i: (0, 0)),   # W1: VMEM-resident
                pl.BlockSpec((1, hid), lambda i: (0, 0)),        # b1: resident
                pl.BlockSpec((hid, out_dim), lambda i: (0, 0)),  # W2: resident
                pl.BlockSpec((1, out_dim), lambda i: (0, 0)),    # b2: resident
            ],
            out_specs=pl.BlockSpec((tb, out_dim), lambda i: (i, 0)),
        ),
        compiler_params=pltpu.CompilerParams(
            dimension_semantics=("parallel",),       # megacore sharding on v7x
            vmem_limit_bytes=48 * 1024 * 1024),
        cost_estimate=pl.CostEstimate(
            flops=flops, transcendentals=0, bytes_accessed=bytes_accessed),
    )(x, w1_c, b1_c, w2_c, b2_c)


def init_params(key):
    """Deterministic init mimicking nn.Linear default (uniform(-1/sqrt(in), 1/sqrt(in)))."""
    k1, k2, k3, k4 = jax.random.split(key, 4)
    in1, out1, in2, out2 = 10, 10, 10, 5
    lim1 = 1.0 / jnp.sqrt(jnp.float32(in1))
    lim2 = 1.0 / jnp.sqrt(jnp.float32(in2))
    # PyTorch stores weight as [out, in]; pre-transposed here to [in, out].
    w1 = jax.random.uniform(k1, (out1, in1), jnp.float32, -lim1, lim1).T
    b1 = jax.random.uniform(k2, (1, out1), jnp.float32, -lim1, lim1)
    w2 = jax.random.uniform(k3, (out2, in2), jnp.float32, -lim2, lim2).T
    b2 = jax.random.uniform(k4, (1, out2), jnp.float32, -lim2, lim2)
    return w1, b1, w2, b2


if __name__ == "__main__":
    key = jax.random.PRNGKey(0)
    kx, kp = jax.random.split(key)
    w1_t, b1, w2_t, b2 = init_params(kp)

    def ref_fwd(x):
        return jnp.maximum(x @ w1_t + b1, 0.0) @ w2_t + b2

    # Case 1: tiny batch (B=8), single grid point, f32 compute -> tight check.
    x8 = jax.random.normal(kx, (8, 10), jnp.float32)
    out8 = jax.block_until_ready(
        toy_model_forward(x8, w1_t, b1, w2_t, b2, compute_dtype=jnp.float32))
    assert out8.shape == (8, 5)
    assert jnp.allclose(out8, ref_fwd(x8), atol=1e-5, rtol=1e-5)

    # Case 2: multi-tile batch with a ragged last block (B=40, tile=16 ->
    # 3 grid steps, last block half-valid), default bf16 MXU operands ->
    # looser tolerance vs the f32 reference.
    x40 = jax.random.normal(jax.random.PRNGKey(1), (40, 10), jnp.float32)
    out40 = jax.block_until_ready(
        toy_model_forward(x40, w1_t, b1, w2_t, b2, batch_tile=16))
    assert out40.shape == (40, 5)
    assert jnp.allclose(out40, ref_fwd(x40), atol=5e-2, rtol=5e-2)

    print("KERNEL_OK")
</pallas_src>

<mosaic_0001>
module attributes {stable_mosaic.version = 11 : i64} {
  func.func @toy_mlp_kernel(%arg0: i32, %arg1: memref<8x10xf32, #tpu.memory_space<vmem>>, %arg2: memref<10x10xf32, #tpu.memory_space<vmem>>, %arg3: memref<1x10xf32, #tpu.memory_space<vmem>>, %arg4: memref<10x5xf32, #tpu.memory_space<vmem>>, %arg5: memref<1x5xf32, #tpu.memory_space<vmem>>, %arg6: memref<8x5xf32, #tpu.memory_space<vmem>>) attributes {dimension_semantics = [#tpu.dimension_semantics<parallel>], iteration_bounds = array<i64: 1>, scalar_prefetch = 0 : i64, scratch_operands = 0 : i64, tpu.core_type = #tpu.core_type<tc>, window_params = [{transform_indices = @transform_0, window_bounds = array<i64: 8, 10>}, {pipeline_mode = #tpu.pipeline_mode<synchronous>, transform_indices = @transform_1, window_bounds = array<i64: 10, 10>}, {pipeline_mode = #tpu.pipeline_mode<synchronous>, transform_indices = @transform_2, window_bounds = array<i64: 1, 10>}, {pipeline_mode = #tpu.pipeline_mode<synchronous>, transform_indices = @transform_3, window_bounds = array<i64: 10, 5>}, {pipeline_mode = #tpu.pipeline_mode<synchronous>, transform_indices = @transform_4, window_bounds = array<i64: 1, 5>}, {transform_indices = @transform_5, window_bounds = array<i64: 8, 5>}]} {
    %c0 = arith.constant 0 : index
    %c0_0 = arith.constant 0 : index
    %0 = vector.load %arg1[%c0, %c0_0] : memref<8x10xf32, #tpu.memory_space<vmem>>, vector<8x10xf32>
    %c0_1 = arith.constant 0 : index
    %c0_2 = arith.constant 0 : index
    %1 = vector.load %arg2[%c0_1, %c0_2] : memref<10x10xf32, #tpu.memory_space<vmem>>, vector<10x10xf32>
    %cst = arith.constant dense<0.000000e+00> : vector<8x10xf32>
    %2 = tpu.matmul %0, %1, %cst {dimension_numbers = #tpu.dot_dimension_numbers<[1], [0], [0], [1], [0, 0, 1, 1], [], []>} : vector<8x10xf32>, vector<10x10xf32>, vector<8x10xf32> -> vector<8x10xf32>
    %c0_3 = arith.constant 0 : index
    %c0_4 = arith.constant 0 : index
    %3 = vector.load %arg3[%c0_3, %c0_4] : memref<1x10xf32, #tpu.memory_space<vmem>>, vector<1x10xf32>
    %4 = vector.broadcast %3 : vector<1x10xf32> to vector<8x10xf32>
    %5 = arith.addf %2, %4 : vector<8x10xf32>
    %cst_5 = arith.constant 0.000000e+00 : f32
    %6 = vector.broadcast %cst_5 : f32 to vector<8x10xf32>
    %7 = arith.maximumf %5, %6 : vector<8x10xf32>
    %c0_6 = arith.constant 0 : index
    %c0_7 = arith.constant 0 : index
    %8 = vector.load %arg4[%c0_6, %c0_7] : memref<10x5xf32, #tpu.memory_space<vmem>>, vector<10x5xf32>
    %cst_8 = arith.constant dense<0.000000e+00> : vector<8x5xf32>
    %9 = tpu.matmul %7, %8, %cst_8 {dimension_numbers = #tpu.dot_dimension_numbers<[1], [0], [0], [1], [0, 0, 1, 1], [], []>} : vector<8x10xf32>, vector<10x5xf32>, vector<8x5xf32> -> vector<8x5xf32>
    %c0_9 = arith.constant 0 : index
    %c0_10 = arith.constant 0 : index
    %10 = vector.load %arg5[%c0_9, %c0_10] : memref<1x5xf32, #tpu.memory_space<vmem>>, vector<1x5xf32>
    %11 = vector.broadcast %10 : vector<1x5xf32> to vector<8x5xf32>
    %12 = arith.addf %9, %11 : vector<8x5xf32>
    %c0_11 = arith.constant 0 : index
    %c0_12 = arith.constant 0 : index
    %13 = vector.load %arg6[%c0_11, %c0_12] : memref<8x5xf32, #tpu.memory_space<vmem>>, vector<8x5xf32>
    tpu.vector_store %arg6[%c0_11, %c0_12], %12 {strides = array<i32>} : memref<8x5xf32, #tpu.memory_space<vmem>>, vector<8x5xf32>,
    return
  }
  func.func @transform_0(%arg0: i32) -> (i32, i32) {
    %c0_i32 = arith.constant 0 : i32
    %c0_i32_0 = arith.constant 0 : i32
    return %arg0, %c0_i32 : i32, i32
  }
  func.func @transform_1(%arg0: i32) -> (i32, i32) {
    %c0_i32 = arith.constant 0 : i32
    %c0_i32_0 = arith.constant 0 : i32
    %c0_i32_1 = arith.constant 0 : i32
    return %c0_i32, %c0_i32_0 : i32, i32
  }
  func.func @transform_2(%arg0: i32) -> (i32, i32) {
    %c0_i32 = arith.constant 0 : i32
    %c0_i32_0 = arith.constant 0 : i32
    %c0_i32_1 = arith.constant 0 : i32
    return %c0_i32, %c0_i32_0 : i32, i32
  }
  func.func @transform_3(%arg0: i32) -> (i32, i32) {
    %c0_i32 = arith.constant 0 : i32
    %c0_i32_0 = arith.constant 0 : i32
    %c0_i32_1 = arith.constant 0 : i32
    return %c0_i32, %c0_i32_0 : i32, i32
  }
  func.func @transform_4(%arg0: i32) -> (i32, i32) {
    %c0_i32 = arith.constant 0 : i32
    %c0_i32_0 = arith.constant 0 : i32
    %c0_i32_1 = arith.constant 0 : i32
    return %c0_i32, %c0_i32_0 : i32, i32
  }
  func.func @transform_5(%arg0: i32) -> (i32, i32) {
    %c0_i32 = arith.constant 0 : i32
    %c0_i32_0 = arith.constant 0 : i32
    return %arg0, %c0_i32 : i32, i32
  }
}

</mosaic_0001>

<llo_original>
// kernel: tpu_custom_call.1
$region0: #{tpu_custom_call.1}
  #allocation0 [shape = 'u32[]', space=smem, size = 0x4, offset = 0x4, fixed_abs, tag = 'smem constant byte address 0x4 - core index']
  #allocation1 [shape = 'u32[144,128]{1,0:T(1,128)}', space=vmem, size = 0x12000, scoped, tag = 'internal scratch']
  %s0 = inlined_call_operand.vmem [shape: f32[8,10], index: 0, kind: input, shape index: {}]
  %s1 = inlined_call_operand.vmem [shape: f32[10,10], index: 1, kind: input, shape index: {}]
  %s2 = inlined_call_operand.vmem [shape: f32[1,10], index: 2, kind: input, shape index: {}]
  %s3 = inlined_call_operand.vmem [shape: f32[10,5], index: 3, kind: input, shape index: {}]
  %s4 = inlined_call_operand.vmem [shape: f32[1,5], index: 4, kind: input, shape index: {}]
  %s5 = inlined_call_operand.hbm [shape: f32[8,5], index: 5, kind: output, shape index: {}]
  %s6 = sld [smem:[#allocation0]]
  $region30: #{tpu_custom_call.1} parent=0
    _
  %s8 = ssub.s32 1, %s6
  %s9 = scalar_select 0, %s8, %s6
  $region1: #{tpu_custom_call.1} parent=0
    #allocation2 [shape = 'u8[4096]{0}', space=vmem, size = 0x1000, scoped, tag = 'output window, operand 0, single buffered']
    #allocation3 [shape = 's32[1]{0}', space=sflag, size = 0x4, scoped, tag = 'scoped memory for tpu_custom_call.1']
    %10 = vsyncpa [#allocation3], 0
    // Predicated region
    $region2: #{tpu_custom_call.1} parent=1 // pred_check
      _
    $region3: #{tpu_custom_call.1} parent=1 // pred_check_branch
      %12 = sbr.rel (0) target = $region5
    $region4: #{tpu_custom_call.1} parent=1 // pred_region
      _
    $region5: #{tpu_custom_call.1} parent=1 // pred_fallthru
      _
    // Predicated region
    $region6: #{tpu_custom_call.1} parent=1 // pred_check
      _
    $region7: #{tpu_custom_call.1} parent=1 // pred_check_branch
      %14 = sbr.rel (0) target = $region9
    $region8: #{tpu_custom_call.1} parent=1 // pred_region
      _
    $region9: #{tpu_custom_call.1} parent=1 // pred_fallthru
      _
    // Predicated region
    $region10: #{tpu_custom_call.1} parent=1 // pred_check
      _
    $region11: #{tpu_custom_call.1} parent=1 // pred_check_branch
      %16 = sbr.rel (0) target = $region13
    $region12: #{tpu_custom_call.1} parent=1 // pred_region
      _
    $region13: #{tpu_custom_call.1} parent=1 // pred_fallthru
      _
    // Predicated region
    $region14: #{tpu_custom_call.1} parent=1 // pred_check
      _
    $region15: #{tpu_custom_call.1} parent=1 // pred_check_branch
      %18 = sbr.rel (0) target = $region17
    $region16: #{tpu_custom_call.1} parent=1 // pred_region
      _
    $region17: #{tpu_custom_call.1} parent=1 // pred_fallthru
      _
    // Predicated region
    $region18: #{tpu_custom_call.1} parent=1 // pred_check
      _
    $region19: #{tpu_custom_call.1} parent=1 // pred_check_branch
      %20 = sbr.rel (0) target = $region21
    $region20: #{tpu_custom_call.1} parent=1 // pred_region
      _
    $region21: #{tpu_custom_call.1} parent=1 // pred_fallthru
      _
    %v21 = vld [vmem:[%s0] sm:$0xff]
    %v22 = vld [vmem:[%s1] sm:$0xff]
    %v23 = vld [vmem:[%s1 + $0x8] sm:$0x3]
    %v24 = vld [vmem:[%s2] sm:$0x1]
    %v26 = vlaneseq
    %v27 = vshrl.u32 %v26, 7
    %v28 = vsub.s32 0, %v27
    %v29 = vrot.slane %v24, %v28
    %vm31 = vcmask 80896
    %v33 = vsel %vm31, %v21, 0
    %vm35 = vcmask 1041408
    %v37 = vsel %vm35, %v23, 0
    %39 = vmatprep.subr.mxu0 0.0
    %40 = vmatpush1.msra.mxu0 0.0
    %41 = vmatprep.subr.mxu0 0.0
    %42 = vmatpush1.msra.mxu0 0.0
    %43 = vmatprep.subr.mxu0 0.0
    %44 = vmatpush1.msra.mxu0 0.0
    %45 = vmatprep.subr.mxu0 0.0
    %46 = vmatpush1.msra.mxu0 0.0
    %47 = vmatprep.subr.mxu0 0.0
    %48 = vmatpush1.msra.mxu0 0.0
    %49 = vmatprep.subr.mxu0 0.0
    %50 = vmatpush1.msra.mxu0 0.0
    %51 = vmatprep.subr.mxu0 0.0
    %52 = vmatpush1.msra.mxu0 0.0
    %53 = vmatprep.subr.mxu0 0.0
    %54 = vmatpush1.msra.mxu0 0.0
    %55 = vmatprep.subr.mxu0 0.0
    %56 = vmatpush1.msra.mxu0 0.0
    %57 = vmatprep.subr.mxu0 0.0
    %58 = vmatpush1.msra.mxu0 0.0
    %59 = vmatprep.subr.mxu0 0.0
    %60 = vmatpush1.msra.mxu0 0.0
    %61 = vmatprep.subr.mxu0 0.0
    %62 = vmatpush1.msra.mxu0 0.0
    %63 = vmatprep.subr.mxu0 0.0
    %64 = vmatpush1.msra.mxu0 0.0
    %65 = vmatprep.subr.mxu0 0.0
    %66 = vmatpush1.msra.mxu0 0.0
    %67 = vmatprep.subr.mxu0 0.0
    %68 = vmatpush1.msra.mxu0 %v37
    %69 = vmatprep.subr.mxu0 0.0
    %70 = vmatpush1.msra.mxu0 %v22
    %71 = vmatprep.subr.mxu0 0.0
    %72 = vmatpush2.msra.mxu0 0.0
    %73 = vmatprep.subr.mxu0 0.0
    %74 = vmatpush2.msra.mxu0 0.0
    %75 = vmatprep.subr.mxu0 0.0
    %76 = vmatpush2.msra.mxu0 0.0
    %77 = vmatprep.subr.mxu0 0.0
    %78 = vmatpush2.msra.mxu0 0.0
    %79 = vmatprep.subr.mxu0 0.0
    %80 = vmatpush2.msra.mxu0 0.0
    %81 = vmatprep.subr.mxu0 0.0
    %82 = vmatpush2.msra.mxu0 0.0
    %83 = vmatprep.subr.mxu0 0.0
    %84 = vmatpush2.msra.mxu0 0.0
    %85 = vmatprep.subr.mxu0 0.0
    %86 = vmatpush2.msra.mxu0 0.0
    %87 = vmatprep.subr.mxu0 0.0
    %88 = vmatpush2.msra.mxu0 0.0
    %89 = vmatprep.subr.mxu0 0.0
    %90 = vmatpush2.msra.mxu0 0.0
    %91 = vmatprep.subr.mxu0 0.0
    %92 = vmatpush2.msra.mxu0 0.0
    %93 = vmatprep.subr.mxu0 0.0
    %94 = vmatpush2.msra.mxu0 0.0
    %95 = vmatprep.subr.mxu0 0.0
    %96 = vmatpush2.msra.mxu0 0.0
    %97 = vmatprep.subr.mxu0 0.0
    %98 = vmatpush2.msra.mxu0 0.0
    %99 = vmatprep.subr.mxu0 0.0
    %100 = vmatpush2.msra.mxu0 0.0
    %101 = vmatprep.subr.mxu0 0.0
    %102 = vmatpush2.msra.mxu0 0.0
    %103 = vmatprep.mubr.f32.mxu0 0.0
    %104 = vmatmul.mubr.f32.gmra.mxu0 %v33
    %v105 = vpop.f32.mrf.mxu0
    %v106 = vadd.f32 %v29, %v105
    %v107 = vpop.f32.mrf.mxu0
    %108 = vdwg.mxu0
    %v109 = vmax.f32 %v106, 0.0
    %v110 = vld [vmem:[%s3] sm:$0xff]
    %v111 = vld [vmem:[%s3 + $0x8] sm:$0x3]
    %v112 = vld [vmem:[%s4] sm:$0x1]
    %v114 = vlaneseq
    %v115 = vshrl.u32 %v114, 7
    %v116 = vsub.s32 0, %v115
    %v117 = vrot.slane %v112, %v116
    %v120 = vsel %vm31, %v109, 0
    %v123 = vsel %vm35, %v111, 0
    %125 = vmatprep.subr.mxu0 0.0
    %126 = vmatpush1.msra.mxu0 0.0
    %127 = vmatprep.subr.mxu0 0.0
    %128 = vmatpush1.msra.mxu0 0.0
    %129 = vmatprep.subr.mxu0 0.0
    %130 = vmatpush1.msra.mxu0 0.0
    %131 = vmatprep.subr.mxu0 0.0
    %132 = vmatpush1.msra.mxu0 0.0
    %133 = vmatprep.subr.mxu0 0.0
    %134 = vmatpush1.msra.mxu0 0.0
    %135 = vmatprep.subr.mxu0 0.0
    %136 = vmatpush1.msra.mxu0 0.0
    %137 = vmatprep.subr.mxu0 0.0
    %138 = vmatpush1.msra.mxu0 0.0
    %139 = vmatprep.subr.mxu0 0.0
    %140 = vmatpush1.msra.mxu0 0.0
    %141 = vmatprep.subr.mxu0 0.0
    %142 = vmatpush1.msra.mxu0 0.0
    %143 = vmatprep.subr.mxu0 0.0
    %144 = vmatpush1.msra.mxu0 0.0
    %145 = vmatprep.subr.mxu0 0.0
    %146 = vmatpush1.msra.mxu0 0.0
    %147 = vmatprep.subr.mxu0 0.0
    %148 = vmatpush1.msra.mxu0 0.0
    %149 = vmatprep.subr.mxu0 0.0
    %150 = vmatpush1.msra.mxu0 0.0
    %151 = vmatprep.subr.mxu0 0.0
    %152 = vmatpush1.msra.mxu0 0.0
    %153 = vmatprep.subr.mxu0 0.0
    %154 = vmatpush1.msra.mxu0 %v123
    %155 = vmatprep.subr.mxu0 0.0
    %156 = vmatpush1.msra.mxu0 %v110
    %157 = vmatprep.subr.mxu0 0.0
    %158 = vmatpush2.msra.mxu0 0.0
    %159 = vmatprep.subr.mxu0 0.0
    %160 = vmatpush2.msra.mxu0 0.0
    %161 = vmatprep.subr.mxu0 0.0
    %162 = vmatpush2.msra.mxu0 0.0
    %163 = vmatprep.subr.mxu0 0.0
    %164 = vmatpush2.msra.mxu0 0.0
    %165 = vmatprep.subr.mxu0 0.0
    %166 = vmatpush2.msra.mxu0 0.0
    %167 = vmatprep.subr.mxu0 0.0
    %168 = vmatpush2.msra.mxu0 0.0
    %169 = vmatprep.subr.mxu0 0.0
    %170 = vmatpush2.msra.mxu0 0.0
    %171 = vmatprep.subr.mxu0 0.0
    %172 = vmatpush2.msra.mxu0 0.0
    %173 = vmatprep.subr.mxu0 0.0
    %174 = vmatpush2.msra.mxu0 0.0
    %175 = vmatprep.subr.mxu0 0.0
    %176 = vmatpush2.msra.mxu0 0.0
    %177 = vmatprep.subr.mxu0 0.0
    %178 = vmatpush2.msra.mxu0 0.0
    %179 = vmatprep.subr.mxu0 0.0
    %180 = vmatpush2.msra.mxu0 0.0
    %181 = vmatprep.subr.mxu0 0.0
    %182 = vmatpush2.msra.mxu0 0.0
    %183 = vmatprep.subr.mxu0 0.0
    %184 = vmatpush2.msra.mxu0 0.0
    %185 = vmatprep.subr.mxu0 0.0
    %186 = vmatpush2.msra.mxu0 0.0
    %187 = vmatprep.subr.mxu0 0.0
    %188 = vmatpush2.msra.mxu0 0.0
    %189 = vmatprep.mubr.f32.mxu0 0.0
    %190 = vmatmul.mubr.f32.gmra.mxu0 %v120
    %v191 = vpop.f32.mrf.mxu0
    %v192 = vadd.f32 %v117, %v191
    %v193 = vpop.f32.mrf.mxu0
    %194 = vdwg.mxu0
    %vm195 = vcmask 39936
    %196 = vst.msk [vmem:[#allocation2] sm:$0xff] %vm195, %v192
    // Predicated region
    $region22: #{tpu_custom_call.1} parent=1 // pred_check
      _
    $region23: #{tpu_custom_call.1} parent=1 // pred_check_branch
      %198 = sbr.rel (0) target = $region25
    $region24: #{tpu_custom_call.1} parent=1 // pred_region
      %s200 = ssub.s32 128, 128
      %201 = vsyncadd [#allocation3], %s200
      %s203 = sshll.u32 [#allocation2], 4
      %s204 = int_to_ptr.vmem [resolvable:$true] %s203
      %206 = dma.vmem_to_hbm [thread:$0]  %s204, 128, %s5, [#allocation3]
    $region25: #{tpu_custom_call.1} parent=1 // pred_fallthru
      _
    // Predicated region
    $region26: #{tpu_custom_call.1} parent=1 // pred_check
      _
    $region27: #{tpu_custom_call.1} parent=1 // pred_check_branch
      %208 = sbr.rel (0) target = $region29
    $region28: #{tpu_custom_call.1} parent=1 // pred_region
      %209 = dma.done [#allocation3], 128
    $region29: #{tpu_custom_call.1} parent=1 // pred_fallthru
      _
    %210 = vsyncpa [#allocation3], 1

</llo_original>
